<compile_context>
chip_gen: v7x
topology: tpu7x:2x2x1
jax: 0.10.0
libtpu: 0.0.40
codegen_flags: <defaults>
</compile_context>

<pallas_src>
import jax
import jax.numpy as jnp
from jax.experimental import pallas as pl
from jax.experimental.pallas import tpu as pltpu


def _flatten_copy_kernel(x_ref, o_ref):
    # Pure identity copy of one lane-dense tile; Flatten itself is index
    # bookkeeping, the kernel only performs the HBM->VMEM->HBM movement.
    o_ref[...] = x_ref[...]


def flatten_view(x):
    """Production fast path: metadata-only reshape (zero HBM traffic)."""
    return x.reshape(x.shape[0], -1)


_LANE_CANDIDATES = (8192, 4096, 2048, 1024, 512, 256, 128)


def _vmem_budget():
    """(max_block_bytes, vmem_limit_bytes) chosen per TPU generation."""
    try:
        vmem_cap = int(pltpu.get_tpu_info().vmem_capacity_bytes)
    except Exception:  # pragma: no cover - conservative fallback
        vmem_cap = 128 << 20
    if vmem_cap <= (64 << 20):
        # v7x: 64 MiB VMEM, ~3.2 TB/s HBM -> bigger blocks amortize the
        # ~0.35 us/step overhead; 4 buffers * 8 MiB = 32 MiB < 40 MiB limit.
        return 8 << 20, 40 << 20
    # v5e / v6e: 128 MiB physical VMEM; 4 MiB blocks, raise the scoped limit
    # well above the 16/32 MiB defaults (4 buffers * 4 MiB = 16 MiB).
    return 4 << 20, 48 << 20


def _pick_lane_width(total, sub):
    """Largest multiple-of-128 lane width dividing `total` (prefer >= sub rows)."""
    best = None
    for cand in _LANE_CANDIDATES:
        if total % cand == 0:
            if best is None:
                best = cand
            if total // cand >= sub:
                return cand
    return best  # None if total is not a multiple of 128


def _pick_row_tile(rows, lane, itemsize, max_block_bytes, sub):
    """Row (sublane) tile: multiple of `sub` dividing `rows`, within the byte cap."""
    row_bytes = max(1, lane * itemsize)
    budget_rows = max(1, max_block_bytes // row_bytes)
    cand = (min(budget_rows, rows) // sub) * sub
    best = None
    while cand >= sub:
        if rows % cand == 0:
            best = cand
            break
        cand -= sub
    if best is None:
        return rows  # tiny / unaligned row count: single full-extent block
    # v7x megacore: prefer >=2 row blocks so both TensorCores issue DMAs.
    if rows // best == 1 and rows >= 2 * sub:
        half = (rows // 2 // sub) * sub
        while half >= sub and rows % half != 0:
            half -= sub
        if half >= sub:
            best = half
    return best


def flatten_forward(x):
    """PyTorch Flatten, materialized by a lane-dense tiled Pallas identity copy."""
    n = x.shape[0]
    k = 1
    for d in x.shape[1:]:
        k *= d
    total = n * k
    itemsize = x.dtype.itemsize
    sub = {4: 8, 2: 16, 1: 32}.get(itemsize, 8)

    max_block_bytes, vmem_limit = _vmem_budget()

    lane = _pick_lane_width(total, sub)
    if lane is None:
        # Total element count not a multiple of 128: keep the (n, k) view.
        rows, lane = n, k
    else:
        rows = total // lane

    # Zero-cost metadata re-flatten of a contiguous array to a lane-dense slab.
    x2 = x.reshape(rows, lane)

    br = _pick_row_tile(rows, lane, itemsize, max_block_bytes, sub)
    grid = (rows // br,)

    out2 = pl.pallas_call(
        _flatten_copy_kernel,
        out_shape=jax.ShapeDtypeStruct((rows, lane), x.dtype),
        grid=grid,
        in_specs=[pl.BlockSpec((br, lane), lambda i: (i, 0))],
        out_specs=pl.BlockSpec((br, lane), lambda i: (i, 0)),
        # Donate the (reshaped) input: identity copy may reuse the same HBM
        # buffer instead of allocating a second N*K output.
        input_output_aliases={0: 0},
        cost_estimate=pl.CostEstimate(
            flops=0, transcendentals=0, bytes_accessed=2 * total * itemsize),
        compiler_params=pltpu.CompilerParams(
            dimension_semantics=("parallel",),
            vmem_limit_bytes=vmem_limit),
    )(x2)

    # Metadata reshape back to the Flatten output shape.
    return out2.reshape(n, k)


if __name__ == "__main__":
    key = jax.random.PRNGKey(0)
    N, C, H, W = 2, 4, 16, 16
    x = jax.random.normal(key, (N, C, H, W), jnp.float32)

    out = jax.block_until_ready(flatten_forward(x))
    ref = x.reshape(N, -1)

    assert out.shape == (N, C * H * W), out.shape
    assert out.dtype == x.dtype, out.dtype
    assert bool(jnp.array_equal(out, ref)), \
        f"max abs diff {float(jnp.max(jnp.abs(out - ref)))}"

    # Also exercise the metadata-only production path once for parity.
    assert bool(jnp.array_equal(flatten_view(x), ref))
    print("KERNEL_OK")
</pallas_src>

<mosaic_0001>
module attributes {stable_mosaic.version = 11 : i64} {
  func.func @_flatten_copy_kernel(%arg0: i32, %arg1: memref<8x256xf32, #tpu.memory_space<vmem>>, %arg2: memref<8x256xf32, #tpu.memory_space<vmem>>) attributes {dimension_semantics = [#tpu.dimension_semantics<parallel>], iteration_bounds = array<i64: 1>, scalar_prefetch = 0 : i64, scratch_operands = 0 : i64, tpu.core_type = #tpu.core_type<tc>, window_params = [{transform_indices = @transform_0, window_bounds = array<i64: 8, 256>}, {transform_indices = @transform_1, window_bounds = array<i64: 8, 256>}]} {
    %c0 = arith.constant 0 : index
    %c0_0 = arith.constant 0 : index
    %0 = vector.load %arg1[%c0, %c0_0] : memref<8x256xf32, #tpu.memory_space<vmem>>, vector<8x256xf32>
    %c0_1 = arith.constant 0 : index
    %c0_2 = arith.constant 0 : index
    %1 = vector.load %arg2[%c0_1, %c0_2] : memref<8x256xf32, #tpu.memory_space<vmem>>, vector<8x256xf32>
    tpu.vector_store %arg2[%c0_1, %c0_2], %0 {strides = array<i32>} : memref<8x256xf32, #tpu.memory_space<vmem>>, vector<8x256xf32>,
    return
  }
  func.func @transform_0(%arg0: i32) -> (i32, i32) {
    %c0_i32 = arith.constant 0 : i32
    %c0_i32_0 = arith.constant 0 : i32
    return %arg0, %c0_i32 : i32, i32
  }
  func.func @transform_1(%arg0: i32) -> (i32, i32) {
    %c0_i32 = arith.constant 0 : i32
    %c0_i32_0 = arith.constant 0 : i32
    return %arg0, %c0_i32 : i32, i32
  }
}

</mosaic_0001>

<llo_original>
// kernel: tpu_custom_call.1
$region0: #{tpu_custom_call.1}
  #allocation0 [shape = 'u32[]', space=smem, size = 0x4, offset = 0x4, fixed_abs, tag = 'smem constant byte address 0x4 - core index']
  #allocation1 [shape = 'u32[144,128]{1,0:T(1,128)}', space=vmem, size = 0x12000, scoped, tag = 'internal scratch']
  %s0 = inlined_call_operand.hbm [shape: f32[8,256], index: 0, kind: input, shape index: {}, may-alias: {0,1}]
  %s1 = inlined_call_operand.hbm [shape: f32[8,256], index: 1, kind: output, shape index: {}, may-alias: {0,1}]
  %s2 = sld [smem:[#allocation0]]
  $region18: #{tpu_custom_call.1} parent=0
    _
  %s4 = ssub.s32 1, %s2
  %s5 = scalar_select 0, %s4, %s2
  $region1: #{tpu_custom_call.1} parent=0
    #allocation2 [shape = 'u8[8192]{0}', space=vmem, size = 0x2000, scoped, tag = 'input window, operand 0, single buffered']
    #allocation3 [shape = 's32[1]{0}', space=sflag, size = 0x4, scoped, tag = 'scoped memory for tpu_custom_call.1']
    #allocation4 [shape = 's32[1]{0}', space=sflag, size = 0x4, scoped, tag = 'scoped memory for tpu_custom_call.1']
    #allocation5 [shape = 'u8[8192]{0}', space=vmem, size = 0x2000, scoped, tag = 'output window, operand 0, single buffered']
    %6 = vsyncpa [#allocation3], 0
    %7 = vsyncpa [#allocation4], 0
    // Predicated region
    $region2: #{tpu_custom_call.1} parent=1 // pred_check
      _
    $region3: #{tpu_custom_call.1} parent=1 // pred_check_branch
      %9 = sbr.rel (0) target = $region5
    $region4: #{tpu_custom_call.1} parent=1 // pred_region
      %s11 = ssub.s32 256, 256
      %12 = vsyncadd [#allocation3], %s11
      %s14 = sshll.u32 [#allocation2], 4
      %s15 = int_to_ptr.vmem [resolvable:$true] %s14
      %17 = dma.hbm_to_vmem [thread:$0]  %s0, 256, %s15, [#allocation3]
    $region5: #{tpu_custom_call.1} parent=1 // pred_fallthru
      _
    // Predicated region
    $region6: #{tpu_custom_call.1} parent=1 // pred_check
      _
    $region7: #{tpu_custom_call.1} parent=1 // pred_check_branch
      %19 = sbr.rel (0) target = $region9
    $region8: #{tpu_custom_call.1} parent=1 // pred_region
      %20 = dma.done [#allocation3], 256
    $region9: #{tpu_custom_call.1} parent=1 // pred_fallthru
      _
    %v21 = vld [vmem:[#allocation2] sm:$0xff]
    %v22 = vld [vmem:[#allocation2 + $0x8] sm:$0xff]
    %23 = vst [vmem:[#allocation5] sm:$0xff] %v21
    %24 = vst [vmem:[#allocation5 + $0x8] sm:$0xff] %v22
    // Predicated region
    $region10: #{tpu_custom_call.1} parent=1 // pred_check
      _
    $region11: #{tpu_custom_call.1} parent=1 // pred_check_branch
      %26 = sbr.rel (0) target = $region13
    $region12: #{tpu_custom_call.1} parent=1 // pred_region
      %s28 = ssub.s32 256, 256
      %29 = vsyncadd [#allocation4], %s28
      %s31 = sshll.u32 [#allocation5], 4
      %s32 = int_to_ptr.vmem [resolvable:$true] %s31
      %34 = dma.vmem_to_hbm [thread:$0]  %s32, 256, %s1, [#allocation4]
    $region13: #{tpu_custom_call.1} parent=1 // pred_fallthru
      _
    // Predicated region
    $region14: #{tpu_custom_call.1} parent=1 // pred_check
      _
    $region15: #{tpu_custom_call.1} parent=1 // pred_check_branch
      %36 = sbr.rel (0) target = $region17
    $region16: #{tpu_custom_call.1} parent=1 // pred_region
      %37 = dma.done [#allocation4], 256
    $region17: #{tpu_custom_call.1} parent=1 // pred_fallthru
      _
    %38 = vsyncpa [#allocation3], 1
    %39 = vsyncpa [#allocation4], 1

</llo_original>
